<compile_context>
chip_gen: v6e
topology: v6e:2x2x1
jax: 0.10.0
libtpu: 0.0.40
codegen_flags: <defaults>
</compile_context>

<pallas_src>
import functools

import jax
import jax.numpy as jnp
from jax import lax
from jax.experimental import pallas as pl
from jax.experimental.pallas import tpu as pltpu


_TARGET_ELEMS = 256 * 1024        # ~logit elements per grid step (per tile)
_LOGIT_BUF_BYTES = 2 * 1024 * 1024  # cap per logits input buffer (double-buffered)


# ---------------------------------------------------------------------------
# Fused kernel: per-class, per-lane valid-pixel counts + NLL partial sums.
# Block view: logits (1, C, T, 128), labels (1, 1, T, 128), outputs (1, 1, C, 128).
# ---------------------------------------------------------------------------
def _fused_kernel(logit_ref, lab_ref, cnt_ref, nll_ref, *,
                  class_num, tile_rows, num_rows, num_t_inner, needs_mask):
    t = pl.program_id(2)

    @pl.when(t == 0)
    def _():
        cnt_ref[...] = jnp.zeros_like(cnt_ref)
        nll_ref[...] = jnp.zeros_like(nll_ref)

    x = logit_ref[0].astype(jnp.float32)          # (C, T, 128) f32 (cast in-kernel)
    lab = lab_ref[0, 0].astype(jnp.int32)         # (T, 128) int32

    # log-softmax over the class axis (leading axis): pure elementwise VPU/EUP work
    # over dense (T, 128) slabs.
    m = jnp.max(x, axis=0)                        # (T, 128)
    e = jnp.exp(x - m[None])                      # (C, T, 128)
    lpm = jnp.log(jnp.sum(e, axis=0)) + m         # (T, 128)  == logsumexp(x)

    # Row-validity mask only when the pixel-tiling is ragged (statically known).
    # It also kills "phantom" tiles created by the 2-way parallel pixel split.
    if needs_mask:
        p = pl.program_id(1)
        gt = p * num_t_inner + t
        row = gt * tile_rows + lax.broadcasted_iota(jnp.int32, (tile_rows, 128), 0)
        inb = row < num_rows                      # (T, 128) bool

    # Per-class partial sums.  Labels outside [0, class_num) (e.g. ignore_index=255)
    # never match a class, so they contribute nothing.  Masking uses selects (not
    # multiplies) so padded-garbage logits cannot produce inf/NaN leakage.
    for c in range(class_num):
        sel = lab == c
        if needs_mask:
            sel = sel & inb
        cnt_c = jnp.sum(sel.astype(jnp.float32), axis=0, keepdims=True)          # (1,128)
        nll_c = jnp.sum(jnp.where(sel, lpm - x[c], 0.0), axis=0, keepdims=True)  # (1,128)
        cnt_ref[0, 0, c:c + 1, :] += cnt_c
        nll_ref[0, 0, c:c + 1, :] += nll_c


# ---------------------------------------------------------------------------
# Wrapper: layout (free reshapes), tiling, weight formula, final reduction.
# ---------------------------------------------------------------------------
def inverse_weight_cross_entropy_loss(logit, label, class_num, ignore_index=255,
                                      tile_rows_cap=None):
    B, C, H, W = logit.shape
    assert C == class_num
    HW = H * W

    # Keep labels narrow if they already are (cuts HBM bytes on memory-bound v5e);
    # anything exotic is widened to int32.  In-kernel compares cast to int32.
    if label.dtype not in (jnp.dtype(jnp.int8), jnp.dtype(jnp.uint8),
                           jnp.dtype(jnp.int32)):
        label = label.astype(jnp.int32)

    logits = logit.reshape(B, C, HW)
    labels = label.reshape(B, 1, HW)

    # Pad the pixel axis to a multiple of 128 only when necessary (EarthVQA shapes
    # never need it).  Padded labels become -1, which never matches a class.
    rem = HW % 128
    if rem:
        pad = 128 - rem
        logits = jnp.pad(logits, ((0, 0), (0, 0), (0, pad)))
        labels = jnp.pad(labels.astype(jnp.int32), ((0, 0), (0, 0), (0, pad)),
                         constant_values=-1)
    hw_pad = logits.shape[-1]
    num_rows = hw_pad // 128

    # Zero-copy pixel-dense view: (B, C, rows, 128) / (B, 1, rows, 128).
    logits = logits.reshape(B, C, num_rows, 128)
    labels = labels.reshape(B, 1, num_rows, 128)

    # Tile size: ~256K logit elements per step, capped by a VMEM budget, rounded to a
    # multiple of 8 sublanes (or the full extent, which is always legal).
    itemsize = jnp.dtype(logits.dtype).itemsize
    rows_by_elems = _TARGET_ELEMS // (C * 128)
    rows_by_vmem = _LOGIT_BUF_BYTES // (C * 128 * itemsize)
    tile_rows = min(rows_by_elems, rows_by_vmem)
    if tile_rows_cap is not None:
        tile_rows = min(tile_rows, tile_rows_cap)
    tile_rows = max(8, (tile_rows // 8) * 8)
    if tile_rows >= num_rows:
        tile_rows = num_rows

    num_t_total = pl.cdiv(num_rows, tile_rows)
    # 2-way parallel split of the pixel-tile axis so v7x's second TensorCore gets work
    # even when B == 1 (batch alone is the other parallel axis).
    P = 2 if num_t_total >= 2 else 1
    num_t_inner = pl.cdiv(num_t_total, P)
    needs_mask = (P * num_t_inner * tile_rows) != num_rows

    def _in_idx(b, p, t):
        # Clamp so phantom tiles (from the parallel split / ragged tail) re-read the
        # last real block; their rows are masked off inside the kernel.
        return (b, 0, jnp.minimum(p * num_t_inner + t, num_t_total - 1), 0)

    counts_bp, nll_bp = pl.pallas_call(
        functools.partial(_fused_kernel, class_num=class_num, tile_rows=tile_rows,
                          num_rows=num_rows, num_t_inner=num_t_inner,
                          needs_mask=needs_mask),
        out_shape=(jax.ShapeDtypeStruct((B, P, C, 128), jnp.float32),
                   jax.ShapeDtypeStruct((B, P, C, 128), jnp.float32)),
        grid=(B, P, num_t_inner),
        in_specs=[pl.BlockSpec((1, C, tile_rows, 128), _in_idx),
                  pl.BlockSpec((1, 1, tile_rows, 128), _in_idx)],
        out_specs=(pl.BlockSpec((1, 1, C, 128), lambda b, p, t: (b, p, 0, 0)),
                   pl.BlockSpec((1, 1, C, 128), lambda b, p, t: (b, p, 0, 0))),
        compiler_params=pltpu.CompilerParams(
            dimension_semantics=("parallel", "parallel", "arbitrary"),
            vmem_limit_bytes=32 * 1024 * 1024),
    )(logits, labels)

    # C-sized scalar glue (exact: per-lane f32 counts stay far below 2^24).
    counts = jnp.sum(counts_bp, axis=(0, 1, 3))          # (C,)
    nll_c = jnp.sum(nll_bp, axis=(0, 1, 3))              # (C,)

    total = jnp.sum(counts)
    percentage = counts / total
    weights = 1.0 / jnp.log(1.02 + percentage)           # (C,)

    # PyTorch weighted-mean reduction:
    #   sum_i w[y_i]*nll_i / sum_i w[y_i] == sum_c w_c*nll_c / sum_c w_c*count_c.
    # NaN if there are no valid (non-ignore) pixels, matching PyTorch behavior.
    return jnp.sum(weights * nll_c) / jnp.sum(weights * counts)


# ---------------------------------------------------------------------------
# Pure-JAX reference (mirrors PyTorch CrossEntropyLoss(weight=w, ignore_index))
# ---------------------------------------------------------------------------
def _ref_loss(logit, label, class_num):
    B, C, H, W = logit.shape
    x = jnp.transpose(logit, (0, 2, 3, 1)).reshape(-1, C).astype(jnp.float32)
    y = label.reshape(-1)
    valid = (y >= 0) & (y < class_num)
    onehot = ((y[:, None] == jnp.arange(class_num)[None, :]) &
              valid[:, None]).astype(jnp.float32)
    counts = onehot.sum(0)
    w = 1.0 / jnp.log(1.02 + counts / counts.sum())
    logp = jax.nn.log_softmax(x, axis=-1)
    wl = (onehot * w).sum(-1)
    nll = -(onehot * logp).sum(-1)
    return (wl * nll).sum() / wl.sum()


if __name__ == "__main__":
    class_num = 4
    ignore_index = 255

    key = jax.random.PRNGKey(0)
    k1, k2, k3, k4, k5, k6 = jax.random.split(key, 6)

    # Case 1: tiny shape — single full-extent tile, no masking path.
    B, C, H, W = 2, class_num, 16, 16
    logit = jax.random.normal(k1, (B, C, H, W), dtype=jnp.float32)
    label = jax.random.randint(k2, (B, H, W), 0, class_num, dtype=jnp.int32)
    label = jnp.where(jax.random.uniform(k3, (B, H, W)) < 0.1,
                      jnp.int32(ignore_index), label)

    loss = inverse_weight_cross_entropy_loss(logit, label, class_num, ignore_index)
    loss = jax.block_until_ready(loss)
    ref = jax.block_until_ready(_ref_loss(logit, label, class_num))
    assert jnp.allclose(loss, ref, rtol=1e-5, atol=1e-5), (loss, ref)

    # Case 2: B=1 with a small forced tile — exercises multi-tile accumulation,
    # the ragged-tail mask, and the 2-way parallel pixel split (incl. phantom tile).
    B2, H2, W2 = 1, 48, 48
    logit2 = jax.random.normal(k4, (B2, class_num, H2, W2), dtype=jnp.float32)
    label2 = jax.random.randint(k5, (B2, H2, W2), 0, class_num, dtype=jnp.int32)
    label2 = jnp.where(jax.random.uniform(k6, (B2, H2, W2)) < 0.1,
                       jnp.int32(ignore_index), label2)

    loss2 = inverse_weight_cross_entropy_loss(logit2, label2, class_num, ignore_index,
                                              tile_rows_cap=8)
    loss2 = jax.block_until_ready(loss2)
    ref2 = jax.block_until_ready(_ref_loss(logit2, label2, class_num))
    assert jnp.allclose(loss2, ref2, rtol=1e-5, atol=1e-5), (loss2, ref2)

    print("KERNEL_OK")
</pallas_src>

<mosaic_0001>
module attributes {stable_mosaic.version = 11 : i64} {
  func.func @_fused_kernel(%arg0: i32, %arg1: i32, %arg2: i32, %arg3: memref<1x4x2x128xf32, #tpu.memory_space<vmem>>, %arg4: memref<1x1x2x128xi32, #tpu.memory_space<vmem>>, %arg5: memref<1x1x4x128xf32, #tpu.memory_space<vmem>>, %arg6: memref<1x1x4x128xf32, #tpu.memory_space<vmem>>) attributes {dimension_semantics = [#tpu.dimension_semantics<parallel>, #tpu.dimension_semantics<parallel>, #tpu.dimension_semantics<arbitrary>], iteration_bounds = array<i64: 2, 1, 1>, scalar_prefetch = 0 : i64, scratch_operands = 0 : i64, tpu.core_type = #tpu.core_type<tc>, window_params = [{transform_indices = @transform_0, window_bounds = array<i64: 1, 4, 2, 128>}, {transform_indices = @transform_1, window_bounds = array<i64: 1, 1, 2, 128>}, {transform_indices = @transform_2, window_bounds = array<i64: 1, 1, 4, 128>}, {transform_indices = @transform_3, window_bounds = array<i64: 1, 1, 4, 128>}]} {
    %c0_i32 = arith.constant 0 : i32
    %0 = arith.cmpi eq, %arg2, %c0_i32 : i32
    %1 = arith.extui %0 : i1 to i32
    %c0_i32_0 = arith.constant 0 : i32
    %2 = arith.cmpi ne, %1, %c0_i32_0 : i32
    scf.if %2 {
      %cst_83 = arith.constant 0.000000e+00 : f32
      %115 = vector.broadcast %cst_83 : f32 to vector<1x1x4x128xf32>
      %c0_84 = arith.constant 0 : index
      %c0_85 = arith.constant 0 : index
      %c0_86 = arith.constant 0 : index
      %c0_87 = arith.constant 0 : index
      %116 = vector.load %arg5[%c0_84, %c0_85, %c0_86, %c0_87] : memref<1x1x4x128xf32, #tpu.memory_space<vmem>>, vector<1x1x4x128xf32>
      tpu.vector_store %arg5[%c0_84, %c0_85, %c0_86, %c0_87], %115 {strides = array<i32>} : memref<1x1x4x128xf32, #tpu.memory_space<vmem>>, vector<1x1x4x128xf32>,
      %cst_88 = arith.constant 0.000000e+00 : f32
      %117 = vector.broadcast %cst_88 : f32 to vector<1x1x4x128xf32>
      %c0_89 = arith.constant 0 : index
      %c0_90 = arith.constant 0 : index
      %c0_91 = arith.constant 0 : index
      %c0_92 = arith.constant 0 : index
      %118 = vector.load %arg6[%c0_89, %c0_90, %c0_91, %c0_92] : memref<1x1x4x128xf32, #tpu.memory_space<vmem>>, vector<1x1x4x128xf32>
      tpu.vector_store %arg6[%c0_89, %c0_90, %c0_91, %c0_92], %117 {strides = array<i32>} : memref<1x1x4x128xf32, #tpu.memory_space<vmem>>, vector<1x1x4x128xf32>,
    } else {
    }
    %c0 = arith.constant 0 : index
    %c0_1 = arith.constant 0 : index
    %c0_2 = arith.constant 0 : index
    %c0_3 = arith.constant 0 : index
    %3 = vector.load %arg3[%c0, %c0_1, %c0_2, %c0_3] : memref<1x4x2x128xf32, #tpu.memory_space<vmem>>, vector<1x4x2x128xf32>
    %4 = vector.shape_cast %3 : vector<1x4x2x128xf32> to vector<4x2x128xf32>
    %c0_4 = arith.constant 0 : index
    %c0_5 = arith.constant 0 : index
    %c0_6 = arith.constant 0 : index
    %c0_7 = arith.constant 0 : index
    %5 = vector.load %arg4[%c0_4, %c0_5, %c0_6, %c0_7] : memref<1x1x2x128xi32, #tpu.memory_space<vmem>>, vector<1x1x2x128xi32>
    %6 = vector.shape_cast %5 : vector<1x1x2x128xi32> to vector<2x128xi32>
    %cst = arith.constant dense<0xFF800000> : vector<2x128xf32>
    %7 = vector.multi_reduction <maximumf>, %4, %cst [0] : vector<4x2x128xf32> to vector<2x128xf32>
    %8 = vector.shape_cast %7 : vector<2x128xf32> to vector<1x2x128xf32>
    %9 = vector.broadcast %8 : vector<1x2x128xf32> to vector<4x2x128xf32>
    %10 = arith.subf %4, %9 : vector<4x2x128xf32>
    %11 = math.exp %10 : vector<4x2x128xf32>
    %cst_8 = arith.constant dense<0.000000e+00> : vector<2x128xf32>
    %12 = vector.multi_reduction <add>, %11, %cst_8 [0] : vector<4x2x128xf32> to vector<2x128xf32>
    %13 = math.log %12 : vector<2x128xf32>
    %14 = arith.addf %13, %7 : vector<2x128xf32>
    %c0_i32_9 = arith.constant 0 : i32
    %15 = vector.broadcast %c0_i32_9 : i32 to vector<2x128xi32>
    %16 = arith.cmpi eq, %6, %15 : vector<2x128xi32>
    %17 = arith.extui %16 : vector<2x128xi1> to vector<2x128xi32>
    %18 = arith.sitofp %17 : vector<2x128xi32> to vector<2x128xf32>
    %cst_10 = arith.constant dense<0.000000e+00> : vector<128xf32>
    %19 = vector.multi_reduction <add>, %18, %cst_10 [0] : vector<2x128xf32> to vector<128xf32>
    %20 = vector.shape_cast %19 : vector<128xf32> to vector<1x128xf32>
    %21 = vector.extract_strided_slice %4 {offsets = [0, 0, 0], sizes = [1, 2, 128], strides = [1, 1, 1]} : vector<4x2x128xf32> to vector<1x2x128xf32>
    %22 = vector.shape_cast %21 : vector<1x2x128xf32> to vector<2x128xf32>
    %23 = arith.subf %14, %22 : vector<2x128xf32>
    %cst_11 = arith.constant 0.000000e+00 : f32
    %24 = vector.broadcast %cst_11 : f32 to vector<2x128xf32>
    %25 = arith.select %16, %23, %24 : vector<2x128xi1>, vector<2x128xf32>
    %cst_12 = arith.constant dense<0.000000e+00> : vector<128xf32>
    %26 = vector.multi_reduction <add>, %25, %cst_12 [0] : vector<2x128xf32> to vector<128xf32>
    %27 = vector.shape_cast %26 : vector<128xf32> to vector<1x128xf32>
    %c0_13 = arith.constant 0 : index
    %c0_14 = arith.constant 0 : index
    %c0_15 = arith.constant 0 : index
    %c0_16 = arith.constant 0 : index
    %28 = vector.load %arg5[%c0_13, %c0_14, %c0_15, %c0_16] : memref<1x1x4x128xf32, #tpu.memory_space<vmem>>, vector<1x1x1x128xf32>
    %29 = vector.shape_cast %28 : vector<1x1x1x128xf32> to vector<1x128xf32>
    %30 = arith.addf %29, %20 : vector<1x128xf32>
    %c0_17 = arith.constant 0 : index
    %c0_18 = arith.constant 0 : index
    %c0_19 = arith.constant 0 : index
    %c0_20 = arith.constant 0 : index
    %31 = vector.load %arg5[%c0_17, %c0_18, %c0_19, %c0_20] : memref<1x1x4x128xf32, #tpu.memory_space<vmem>>, vector<1x1x1x128xf32>
    %32 = vector.shape_cast %31 : vector<1x1x1x128xf32> to vector<1x128xf32>
    %33 = vector.shape_cast %30 : vector<1x128xf32> to vector<1x1x1x128xf32>
    tpu.vector_store %arg5[%c0_17, %c0_18, %c0_19, %c0_20], %33 {strides = array<i32>} : memref<1x1x4x128xf32, #tpu.memory_space<vmem>>, vector<1x1x1x128xf32>,
    %c0_21 = arith.constant 0 : index
    %c0_22 = arith.constant 0 : index
    %c0_23 = arith.constant 0 : index
    %c0_24 = arith.constant 0 : index
    %34 = vector.load %arg6[%c0_21, %c0_22, %c0_23, %c0_24] : memref<1x1x4x128xf32, #tpu.memory_space<vmem>>, vector<1x1x1x128xf32>
    %35 = vector.shape_cast %34 : vector<1x1x1x128xf32> to vector<1x128xf32>
    %36 = arith.addf %35, %27 : vector<1x128xf32>
    %c0_25 = arith.constant 0 : index
    %c0_26 = arith.constant 0 : index
    %c0_27 = arith.constant 0 : index
    %c0_28 = arith.constant 0 : index
    %37 = vector.load %arg6[%c0_25, %c0_26, %c0_27, %c0_28] : memref<1x1x4x128xf32, #tpu.memory_space<vmem>>, vector<1x1x1x128xf32>
    %38 = vector.shape_cast %37 : vector<1x1x1x128xf32> to vector<1x128xf32>
    %39 = vector.shape_cast %36 : vector<1x128xf32> to vector<1x1x1x128xf32>
    tpu.vector_store %arg6[%c0_25, %c0_26, %c0_27, %c0_28], %39 {strides = array<i32>} : memref<1x1x4x128xf32, #tpu.memory_space<vmem>>, vector<1x1x1x128xf32>,
    %c1_i32 = arith.constant 1 : i32
    %40 = vector.broadcast %c1_i32 : i32 to vector<2x128xi32>
    %41 = arith.cmpi eq, %6, %40 : vector<2x128xi32>
    %42 = arith.extui %41 : vector<2x128xi1> to vector<2x128xi32>
    %43 = arith.sitofp %42 : vector<2x128xi32> to vector<2x128xf32>
    %cst_29 = arith.constant dense<0.000000e+00> : vector<128xf32>
    %44 = vector.multi_reduction <add>, %43, %cst_29 [0] : vector<2x128xf32> to vector<128xf32>
    %45 = vector.shape_cast %44 : vector<128xf32> to vector<1x128xf32>
    %46 = vector.extract_strided_slice %4 {offsets = [1, 0, 0], sizes = [1, 2, 128], strides = [1, 1, 1]} : vector<4x2x128xf32> to vector<1x2x128xf32>
    %47 = vector.shape_cast %46 : vector<1x2x128xf32> to vector<2x128xf32>
    %48 = arith.subf %14, %47 : vector<2x128xf32>
    %cst_30 = arith.constant 0.000000e+00 : f32
    %49 = vector.broadcast %cst_30 : f32 to vector<2x128xf32>
    %50 = arith.select %41, %48, %49 : vector<2x128xi1>, vector<2x128xf32>
    %cst_31 = arith.constant dense<0.000000e+00> : vector<128xf32>
    %51 = vector.multi_reduction <add>, %50, %cst_31 [0] : vector<2x128xf32> to vector<128xf32>
    %52 = vector.shape_cast %51 : vector<128xf32> to vector<1x128xf32>
    %c0_32 = arith.constant 0 : index
    %c0_33 = arith.constant 0 : index
    %c1 = arith.constant 1 : index
    %c0_34 = arith.constant 0 : index
    %53 = vector.load %arg5[%c0_32, %c0_33, %c1, %c0_34] : memref<1x1x4x128xf32, #tpu.memory_space<vmem>>, vector<1x1x1x128xf32>
    %54 = vector.shape_cast %53 : vector<1x1x1x128xf32> to vector<1x128xf32>
    %55 = arith.addf %54, %45 : vector<1x128xf32>
    %c0_35 = arith.constant 0 : index
    %c0_36 = arith.constant 0 : index
    %c1_37 = arith.constant 1 : index
    %c0_38 = arith.constant 0 : index
    %56 = vector.load %arg5[%c0_35, %c0_36, %c1_37, %c0_38] : memref<1x1x4x128xf32, #tpu.memory_space<vmem>>, vector<1x1x1x128xf32>
    %57 = vector.shape_cast %56 : vector<1x1x1x128xf32> to vector<1x128xf32>
    %58 = vector.shape_cast %55 : vector<1x128xf32> to vector<1x1x1x128xf32>
    tpu.vector_store %arg5[%c0_35, %c0_36, %c1_37, %c0_38], %58 {strides = array<i32>} : memref<1x1x4x128xf32, #tpu.memory_space<vmem>>, vector<1x1x1x128xf32>,
    %c0_39 = arith.constant 0 : index
    %c0_40 = arith.constant 0 : index
    %c1_41 = arith.constant 1 : index
    %c0_42 = arith.constant 0 : index
    %59 = vector.load %arg6[%c0_39, %c0_40, %c1_41, %c0_42] : memref<1x1x4x128xf32, #tpu.memory_space<vmem>>, vector<1x1x1x128xf32>
    %60 = vector.shape_cast %59 : vector<1x1x1x128xf32> to vector<1x128xf32>
    %61 = arith.addf %60, %52 : vector<1x128xf32>
    %c0_43 = arith.constant 0 : index
    %c0_44 = arith.constant 0 : index
    %c1_45 = arith.constant 1 : index
    %c0_46 = arith.constant 0 : index
    %62 = vector.load %arg6[%c0_43, %c0_44, %c1_45, %c0_46] : memref<1x1x4x128xf32, #tpu.memory_space<vmem>>, vector<1x1x1x128xf32>
    %63 = vector.shape_cast %62 : vector<1x1x1x128xf32> to vector<1x128xf32>
    %64 = vector.shape_cast %61 : vector<1x128xf32> to vector<1x1x1x128xf32>
    tpu.vector_store %arg6[%c0_43, %c0_44, %c1_45, %c0_46], %64 {strides = array<i32>} : memref<1x1x4x128xf32, #tpu.memory_space<vmem>>, vector<1x1x1x128xf32>,
    %c2_i32 = arith.constant 2 : i32
    %65 = vector.broadcast %c2_i32 : i32 to vector<2x128xi32>
    %66 = arith.cmpi eq, %6, %65 : vector<2x128xi32>
    %67 = arith.extui %66 : vector<2x128xi1> to vector<2x128xi32>
    %68 = arith.sitofp %67 : vector<2x128xi32> to vector<2x128xf32>
    %cst_47 = arith.constant dense<0.000000e+00> : vector<128xf32>
    %69 = vector.multi_reduction <add>, %68, %cst_47 [0] : vector<2x128xf32> to vector<128xf32>
    %70 = vector.shape_cast %69 : vector<128xf32> to vector<1x128xf32>
    %71 = vector.extract_strided_slice %4 {offsets = [2, 0, 0], sizes = [1, 2, 128], strides = [1, 1, 1]} : vector<4x2x128xf32> to vector<1x2x128xf32>
    %72 = vector.shape_cast %71 : vector<1x2x128xf32> to vector<2x128xf32>
    %73 = arith.subf %14, %72 : vector<2x128xf32>
    %cst_48 = arith.constant 0.000000e+00 : f32
    %74 = vector.broadcast %cst_48 : f32 to vector<2x128xf32>
    %75 = arith.select %66, %73, %74 : vector<2x128xi1>, vector<2x128xf32>
    %cst_49 = arith.constant dense<0.000000e+00> : vector<128xf32>
    %76 = vector.multi_reduction <add>, %75, %cst_49 [0] : vector<2x128xf32> to vector<128xf32>
    %77 = vector.shape_cast %76 : vector<128xf32> to vector<1x128xf32>
    %c0_50 = arith.constant 0 : index
    %c0_51 = arith.constant 0 : index
    %c2 = arith.constant 2 : index
    %c0_52 = arith.constant 0 : index
    %78 = vector.load %arg5[%c0_50, %c0_51, %c2, %c0_52] : memref<1x1x4x128xf32, #tpu.memory_space<vmem>>, vector<1x1x1x128xf32>
    %79 = vector.shape_cast %78 : vector<1x1x1x128xf32> to vector<1x128xf32>
    %80 = arith.addf %79, %70 : vector<1x128xf32>
    %c0_53 = arith.constant 0 : index
    %c0_54 = arith.constant 0 : index
    %c2_55 = arith.constant 2 : index
    %c0_56 = arith.constant 0 : index
    %81 = vector.load %arg5[%c0_53, %c0_54, %c2_55, %c0_56] : memref<1x1x4x128xf32, #tpu.memory_space<vmem>>, vector<1x1x1x128xf32>
    %82 = vector.shape_cast %81 : vector<1x1x1x128xf32> to vector<1x128xf32>
    %83 = vector.shape_cast %80 : vector<1x128xf32> to vector<1x1x1x128xf32>
    tpu.vector_store %arg5[%c0_53, %c0_54, %c2_55, %c0_56], %83 {strides = array<i32>} : memref<1x1x4x128xf32, #tpu.memory_space<vmem>>, vector<1x1x1x128xf32>,
    %c0_57 = arith.constant 0 : index
    %c0_58 = arith.constant 0 : index
    %c2_59 = arith.constant 2 : index
    %c0_60 = arith.constant 0 : index
    %84 = vector.load %arg6[%c0_57, %c0_58, %c2_59, %c0_60] : memref<1x1x4x128xf32, #tpu.memory_space<vmem>>, vector<1x1x1x128xf32>
    %85 = vector.shape_cast %84 : vector<1x1x1x128xf32> to vector<1x128xf32>
    %86 = arith.addf %85, %77 : vector<1x128xf32>
    %c0_61 = arith.constant 0 : index
    %c0_62 = arith.constant 0 : index
    %c2_63 = arith.constant 2 : index
    %c0_64 = arith.constant 0 : index
    %87 = vector.load %arg6[%c0_61, %c0_62, %c2_63, %c0_64] : memref<1x1x4x128xf32, #tpu.memory_space<vmem>>, vector<1x1x1x128xf32>
    %88 = vector.shape_cast %87 : vector<1x1x1x128xf32> to vector<1x128xf32>
    %89 = vector.shape_cast %86 : vector<1x128xf32> to vector<1x1x1x128xf32>
    tpu.vector_store %arg6[%c0_61, %c0_62, %c2_63, %c0_64], %89 {strides = array<i32>} : memref<1x1x4x128xf32, #tpu.memory_space<vmem>>, vector<1x1x1x128xf32>,
    %c3_i32 = arith.constant 3 : i32
    %90 = vector.broadcast %c3_i32 : i32 to vector<2x128xi32>
    %91 = arith.cmpi eq, %6, %90 : vector<2x128xi32>
    %92 = arith.extui %91 : vector<2x128xi1> to vector<2x128xi32>
    %93 = arith.sitofp %92 : vector<2x128xi32> to vector<2x128xf32>
    %cst_65 = arith.constant dense<0.000000e+00> : vector<128xf32>
    %94 = vector.multi_reduction <add>, %93, %cst_65 [0] : vector<2x128xf32> to vector<128xf32>
    %95 = vector.shape_cast %94 : vector<128xf32> to vector<1x128xf32>
    %96 = vector.extract_strided_slice %4 {offsets = [3, 0, 0], sizes = [1, 2, 128], strides = [1, 1, 1]} : vector<4x2x128xf32> to vector<1x2x128xf32>
    %97 = vector.shape_cast %96 : vector<1x2x128xf32> to vector<2x128xf32>
    %98 = arith.subf %14, %97 : vector<2x128xf32>
    %cst_66 = arith.constant 0.000000e+00 : f32
    %99 = vector.broadcast %cst_66 : f32 to vector<2x128xf32>
    %100 = arith.select %91, %98, %99 : vector<2x128xi1>, vector<2x128xf32>
    %cst_67 = arith.constant dense<0.000000e+00> : vector<128xf32>
    %101 = vector.multi_reduction <add>, %100, %cst_67 [0] : vector<2x128xf32> to vector<128xf32>
    %102 = vector.shape_cast %101 : vector<128xf32> to vector<1x128xf32>
    %c0_68 = arith.constant 0 : index
    %c0_69 = arith.constant 0 : index
    %c3 = arith.constant 3 : index
    %c0_70 = arith.constant 0 : index
    %103 = vector.load %arg5[%c0_68, %c0_69, %c3, %c0_70] : memref<1x1x4x128xf32, #tpu.memory_space<vmem>>, vector<1x1x1x128xf32>
    %104 = vector.shape_cast %103 : vector<1x1x1x128xf32> to vector<1x128xf32>
    %105 = arith.addf %104, %95 : vector<1x128xf32>
    %c0_71 = arith.constant 0 : index
    %c0_72 = arith.constant 0 : index
    %c3_73 = arith.constant 3 : index
    %c0_74 = arith.constant 0 : index
    %106 = vector.load %arg5[%c0_71, %c0_72, %c3_73, %c0_74] : memref<1x1x4x128xf32, #tpu.memory_space<vmem>>, vector<1x1x1x128xf32>
    %107 = vector.shape_cast %106 : vector<1x1x1x128xf32> to vector<1x128xf32>
    %108 = vector.shape_cast %105 : vector<1x128xf32> to vector<1x1x1x128xf32>
    tpu.vector_store %arg5[%c0_71, %c0_72, %c3_73, %c0_74], %108 {strides = array<i32>} : memref<1x1x4x128xf32, #tpu.memory_space<vmem>>, vector<1x1x1x128xf32>,
    %c0_75 = arith.constant 0 : index
    %c0_76 = arith.constant 0 : index
    %c3_77 = arith.constant 3 : index
    %c0_78 = arith.constant 0 : index
    %109 = vector.load %arg6[%c0_75, %c0_76, %c3_77, %c0_78] : memref<1x1x4x128xf32, #tpu.memory_space<vmem>>, vector<1x1x1x128xf32>
    %110 = vector.shape_cast %109 : vector<1x1x1x128xf32> to vector<1x128xf32>
    %111 = arith.addf %110, %102 : vector<1x128xf32>
    %c0_79 = arith.constant 0 : index
    %c0_80 = arith.constant 0 : index
    %c3_81 = arith.constant 3 : index
    %c0_82 = arith.constant 0 : index
    %112 = vector.load %arg6[%c0_79, %c0_80, %c3_81, %c0_82] : memref<1x1x4x128xf32, #tpu.memory_space<vmem>>, vector<1x1x1x128xf32>
    %113 = vector.shape_cast %112 : vector<1x1x1x128xf32> to vector<1x128xf32>
    %114 = vector.shape_cast %111 : vector<1x128xf32> to vector<1x1x1x128xf32>
    tpu.vector_store %arg6[%c0_79, %c0_80, %c3_81, %c0_82], %114 {strides = array<i32>} : memref<1x1x4x128xf32, #tpu.memory_space<vmem>>, vector<1x1x1x128xf32>,
    return
  }
  func.func @transform_0(%arg0: i32, %arg1: i32, %arg2: i32) -> (i32, i32, i32, i32) {
    %c1_i32 = arith.constant 1 : i32
    %0 = arith.muli %arg1, %c1_i32 : i32
    %1 = arith.addi %0, %arg2 : i32
    %c0_i32 = arith.constant 0 : i32
    %2 = arith.minsi %1, %c0_i32 : i32
    %c0_i32_0 = arith.constant 0 : i32
    %c0_i32_1 = arith.constant 0 : i32
    %c0_i32_2 = arith.constant 0 : i32
    return %arg0, %c0_i32_0, %2, %c0_i32_1 : i32, i32, i32, i32
  }
  func.func @transform_1(%arg0: i32, %arg1: i32, %arg2: i32) -> (i32, i32, i32, i32) {
    %c1_i32 = arith.constant 1 : i32
    %0 = arith.muli %arg1, %c1_i32 : i32
    %1 = arith.addi %0, %arg2 : i32
    %c0_i32 = arith.constant 0 : i32
    %2 = arith.minsi %1, %c0_i32 : i32
    %c0_i32_0 = arith.constant 0 : i32
    %c0_i32_1 = arith.constant 0 : i32
    %c0_i32_2 = arith.constant 0 : i32
    return %arg0, %c0_i32_0, %2, %c0_i32_1 : i32, i32, i32, i32
  }
  func.func @transform_2(%arg0: i32, %arg1: i32, %arg2: i32) -> (i32, i32, i32, i32) {
    %c0_i32 = arith.constant 0 : i32
    %c0_i32_0 = arith.constant 0 : i32
    %c0_i32_1 = arith.constant 0 : i32
    return %arg0, %arg1, %c0_i32, %c0_i32_0 : i32, i32, i32, i32
  }
  func.func @transform_3(%arg0: i32, %arg1: i32, %arg2: i32) -> (i32, i32, i32, i32) {
    %c0_i32 = arith.constant 0 : i32
    %c0_i32_0 = arith.constant 0 : i32
    %c0_i32_1 = arith.constant 0 : i32
    return %arg0, %arg1, %c0_i32, %c0_i32_0 : i32, i32, i32, i32
  }
}

</mosaic_0001>

<llo_original>
// kernel: tpu_custom_call.1
$region0: #{tpu_custom_call.1}
  #allocation0 [shape = 'u32[]', space=smem, size = 0x4, offset = 0x4, fixed_abs, tag = 'smem constant byte address 0x4 - core index']
  #allocation1 [shape = 'u32[144,128]{1,0:T(1,128)}', space=vmem, size = 0x12000, scoped, tag = 'internal scratch']
  %s0 = inlined_call_operand.hbm [shape: f32[2,4,2,128], index: 0, kind: input, shape index: {}]
  %s1 = inlined_call_operand.hbm [shape: s32[2,1,2,128], index: 1, kind: input, shape index: {}]
  %s2 = inlined_call_operand.hbm [shape: f32[2,1,4,128], index: 2, kind: output, shape index: {0}]
  %s3 = inlined_call_operand.hbm [shape: f32[2,1,4,128], index: 3, kind: output, shape index: {1}]
  %4 = xla_tuple %s2, %s3
  %s5 = sld [smem:[#allocation0]]
  $region61: #{tpu_custom_call.1} parent=0
    _
  %s7 = ssub.s32 1, %s5
  %s8 = scalar_select 0, %s7, %s5
  $region1: #{tpu_custom_call.1} parent=0
    #allocation2 [shape = 'u8[8192]{0}', space=vmem, size = 0x2000, scoped, tag = 'input window, operand 0']
    #allocation3 [shape = 's32[2]{0}', space=sflag, size = 0x8, scoped, tag = 'scoped memory for tpu_custom_call.1']
    #allocation4 [shape = 's32[2]{0}', space=sflag, size = 0x8, scoped, tag = 'scoped memory for tpu_custom_call.1']
    #allocation5 [shape = 'u8[2048]{0}', space=vmem, size = 0x800, scoped, tag = 'input window, operand 1']
    #allocation6 [shape = 's32[2]{0}', space=sflag, size = 0x8, scoped, tag = 'scoped memory for tpu_custom_call.1']
    #allocation7 [shape = 'u8[4096]{0}', space=vmem, size = 0x1000, scoped, tag = 'output window, operand 0']
    #allocation8 [shape = 'u8[4096]{0}', space=vmem, size = 0x1000, scoped, tag = 'output window, operand 1']
    #allocation9 [shape = 's32[2]{0}', space=sflag, size = 0x8, scoped, tag = 'scoped memory for tpu_custom_call.1']
    %9 = vsyncpa [#allocation3], 0
    %s10 = scalar_lea.sflag [#allocation3], 1
    %11 = vsyncpa %s10, 0
    %12 = vsyncpa [#allocation6], 0
    %s13 = scalar_lea.sflag [#allocation6], 1
    %14 = vsyncpa %s13, 0
    %15 = vsyncpa [#allocation4], 0
    %s16 = scalar_lea.sflag [#allocation4], 1
    %17 = vsyncpa %s16, 0
    %18 = vsyncpa [#allocation9], 0
    %s19 = scalar_lea.sflag [#allocation9], 1
    %20 = vsyncpa %s19, 0
    loop: start=0, step=1, limit=4
    $region2: #{tpu_custom_call.1} parent=1 // loop_pre_header
      _
    $region3: #{tpu_custom_call.1} parent=1 // loop_header
      %s22 = sphi 0, %s26
      %p23 = scmp.ge.s32.totalorder %s22, 4
      %s29 = sphi 0, %s48
      %s30 = sphi 0, %s44
      %s31 = sphi 0, %s40
      %s32 = sphi 0, %s29
      %s33 = sphi 0, %s30
      %s34 = sphi 0, %s31
      %s35 = sphi 0, %s32
      %s36 = sphi 0, %s33
      %s37 = sphi 0, %s34
      %s59 = sphi 0, %s61
      %s62 = sphi 0, %s59
      %s63 = sphi 0, %s62
      %s79 = sphi 0, %s63
      %s93 = sphi 0, %s95
      %s96 = sphi 0, %s93
      %s97 = sphi 0, %s96
      %s113 = sphi 0, %s97
      %s121 = sphi 0, %s123
      %s124 = sphi 0, %s121
      %s125 = sphi 0, %s124
      %s141 = sphi 0, %s125
      %s149 = sphi 0, %s151
      %s152 = sphi 0, %s149
      %s153 = sphi 0, %s152
      %s169 = sphi 0, %s153
    $region4: #{tpu_custom_call.1} parent=1 // loop_header_branch
      %25 = sbr.rel (%p23) target = $region8
    $region5: #{tpu_custom_call.1} parent=1 // loop_body
      %s27 = ssub.s32 %s22, 1
      %s28 = ssub.s32 %s22, 2
      %s38 = sadd.s32 1, %s31
      %p39 = scmp.ge.s32.totalorder %s38, 1
      %s40 = scalar_select %p39, 0, %s38
      %s41 = sadd.s32 1, %s30
      %s42 = scalar_select %p39, %s41, %s30
      %p43 = scmp.ge.s32.totalorder %s42, 1
      %s44 = scalar_select %p43, 0, %s42
      %s45 = sadd.s32 1, %s29
      %s46 = scalar_select %p43, %s45, %s29
      %p47 = scmp.ge.s32.totalorder %s46, 2
      %s48 = scalar_select %p47, 0, %s46
      %s49 = sadd.s32 %s30, %s31
      %p50 = scmp.lt.s32.totalorder %s49, 0
      %s51 = scalar_select %p50, %s49, 0
      %s52 = sadd.s32 %s44, %s40
      %p53 = scmp.lt.s32.totalorder %s52, 0
      %s54 = scalar_select %p53, %s52, 0
      %s55 = ssub.s32 %s29, %s48
      %s56 = ssub.s32 %s51, %s54
      %s57 = sor.u32 %s55, %s56
      %p58 = scmp.eq.s32.totalorder %s57, 0
      %s60 = sadd.s32 %s59, 1
      %s61 = scalar_select %p58, %s59, %s60
      %p64 = pneg %p58
      %p65 = scmp.eq.s32.totalorder %s22, 1
      %p66 = por %p64, %p65
      %p67 = scmp.ne.s32.totalorder %s59, %s62
      %p68 = scmp.eq.s32.totalorder %s22, 0
      %p69 = por %p67, %p68
      %p70 = scmp.ne.s32.totalorder %s59, %s62
      %p71 = scmp.eq.s32.totalorder %s27, 1
      %p72 = por %p70, %p71
      %p73 = scmp.ne.s32.totalorder %s62, %s63
      %p74 = scmp.eq.s32.totalorder %s27, 0
      %p75 = por %p73, %p74
      %p76 = scmp.ne.s32.totalorder %s62, %s63
      %p77 = scmp.eq.s32.totalorder %s28, 1
      %p78 = por %p76, %p77
      %p80 = scmp.ne.s32.totalorder %s63, %s79
      %p81 = scmp.eq.s32.totalorder %s28, 0
      %p82 = por %p80, %p81
      %s83 = sadd.s32 %s30, %s31
      %p84 = scmp.lt.s32.totalorder %s83, 0
      %s85 = scalar_select %p84, %s83, 0
      %s86 = sadd.s32 %s44, %s40
      %p87 = scmp.lt.s32.totalorder %s86, 0
      %s88 = scalar_select %p87, %s86, 0
      %s89 = ssub.s32 %s29, %s48
      %s90 = ssub.s32 %s85, %s88
      %s91 = sor.u32 %s89, %s90
      %p92 = scmp.eq.s32.totalorder %s91, 0
      %s94 = sadd.s32 %s93, 1
      %s95 = scalar_select %p92, %s93, %s94
      %p98 = pneg %p92
      %p99 = scmp.eq.s32.totalorder %s22, 1
      %p100 = por %p98, %p99
      %p101 = scmp.ne.s32.totalorder %s93, %s96
      %p102 = scmp.eq.s32.totalorder %s22, 0
      %p103 = por %p101, %p102
      %p104 = scmp.ne.s32.totalorder %s93, %s96
      %p105 = scmp.eq.s32.totalorder %s27, 1
      %p106 = por %p104, %p105
      %p107 = scmp.ne.s32.totalorder %s96, %s97
      %p108 = scmp.eq.s32.totalorder %s27, 0
      %p109 = por %p107, %p108
      %p110 = scmp.ne.s32.totalorder %s96, %s97
      %p111 = scmp.eq.s32.totalorder %s28, 1
      %p112 = por %p110, %p111
      %p114 = scmp.ne.s32.totalorder %s97, %s113
      %p115 = scmp.eq.s32.totalorder %s28, 0
      %p116 = por %p114, %p115
      %s117 = ssub.s32 %s29, %s48
      %s118 = ssub.s32 %s30, %s44
      %s119 = sor.u32 %s117, %s118
      %p120 = scmp.eq.s32.totalorder %s119, 0
      %s122 = sadd.s32 %s121, 1
      %s123 = scalar_select %p120, %s121, %s122
      %p126 = pneg %p120
      %p127 = scmp.eq.s32.totalorder %s22, 1
      %p128 = por %p126, %p127
      %p129 = scmp.ne.s32.totalorder %s121, %s124
      %p130 = scmp.eq.s32.totalorder %s22, 0
      %p131 = por %p129, %p130
      %p132 = scmp.ne.s32.totalorder %s121, %s124
      %p133 = scmp.eq.s32.totalorder %s27, 1
      %p134 = por %p132, %p133
      %p135 = scmp.ne.s32.totalorder %s124, %s125
      %p136 = scmp.eq.s32.totalorder %s27, 0
      %p137 = por %p135, %p136
      %p138 = scmp.ne.s32.totalorder %s124, %s125
      %p139 = scmp.eq.s32.totalorder %s28, 1
      %p140 = por %p138, %p139
      %p142 = scmp.ne.s32.totalorder %s125, %s141
      %p143 = scmp.eq.s32.totalorder %s28, 0
      %p144 = por %p142, %p143
      %s145 = ssub.s32 %s29, %s48
      %s146 = ssub.s32 %s30, %s44
      %s147 = sor.u32 %s145, %s146
      %p148 = scmp.eq.s32.totalorder %s147, 0
      %s150 = sadd.s32 %s149, 1
      %s151 = scalar_select %p148, %s149, %s150
      %p154 = pneg %p148
      %p155 = scmp.eq.s32.totalorder %s22, 1
      %p156 = por %p154, %p155
      %p157 = scmp.ne.s32.totalorder %s149, %s152
      %p158 = scmp.eq.s32.totalorder %s22, 0
      %p159 = por %p157, %p158
      %p160 = scmp.ne.s32.totalorder %s149, %s152
      %p161 = scmp.eq.s32.totalorder %s27, 1
      %p162 = por %p160, %p161
      %p163 = scmp.ne.s32.totalorder %s152, %s153
      %p164 = scmp.eq.s32.totalorder %s27, 0
      %p165 = por %p163, %p164
      %p166 = scmp.ne.s32.totalorder %s152, %s153
      %p167 = scmp.eq.s32.totalorder %s28, 1
      %p168 = por %p166, %p167
      %p170 = scmp.ne.s32.totalorder %s153, %s169
      %p171 = scmp.eq.s32.totalorder %s28, 0
      %p172 = por %p170, %p171
      %p173 = scmp.le.s32.totalorder 1, %s22
      %p174 = scmp.lt.s32.totalorder %s22, 3
      %p175 = pnand %p173, %p174
      %p176 = pneg %p175
      // Predicated region
      $region9: #{tpu_custom_call.1} parent=5 // pred_check
        _
      $region10: #{tpu_custom_call.1} parent=5 // pred_check_branch
        %178 = sbr.rel (%p175) target = $region12
      $region11: #{tpu_custom_call.1} parent=5 // pred_region
        %s179 = ssub.s32 %s22, 1
      $region12: #{tpu_custom_call.1} parent=5 // pred_fallthru
        _
      %p180 = scmp.lt.s32.totalorder %s22, 2
      // Predicated region
      $region13: #{tpu_custom_call.1} parent=5 // pred_check
        %p181 = pneg %p180
      $region14: #{tpu_custom_call.1} parent=5 // pred_check_branch
        %183 = sbr.rel (%p181) target = $region16
      $region15: #{tpu_custom_call.1} parent=5 // pred_region
        // Predicated region
        $region17: #{tpu_custom_call.1} parent=15 // pred_check
          %p184 = pneg %p69
        $region18: #{tpu_custom_call.1} parent=15 // pred_check_branch
          %186 = sbr.rel (%p184) target = $region20
        $region19: #{tpu_custom_call.1} parent=15 // pred_region
          %s187 = sand.u32 %s59, 1
          %s188 = scalar_lea.sflag [#allocation3], %s187
          %s189 = sand.u32 %s59, 1
          %s190 = smul.addr %s189, 8
          %s191 = scalar_lea.vmem [#allocation2], %s190
          %s192 = sadd.s32 %s30, %s31
          %p193 = scmp.lt.s32.totalorder %s192, 0
          %s194 = scalar_select %p193, %s192, 0
          %s196 = ssub.s32 128, 128
          %197 = vsyncadd %s188, %s196
          %s198 = smul.addr %s29, 4
          %s199 = sadd.s32 %s194, %s198
          %s200 = smul.addr %s199, 32
          %s201 = scalar_lea.hbm %s0, %s200
          %s202 = sshll.u32 %s191, 4
          %s203 = int_to_ptr.vmem [resolvable:$true] %s202
          %208 = dma.hbm_to_vmem [thread:$0]  %s201, 128, %s203, %s188, 32, 32, 2
        $region20: #{tpu_custom_call.1} parent=15 // pred_fallthru
          _
        // Predicated region
        $region21: #{tpu_custom_call.1} parent=15 // pred_check
          %p209 = pneg %p103
        $region22: #{tpu_custom_call.1} parent=15 // pred_check_branch
          %211 = sbr.rel (%p209) target = $region24
        $region23: #{tpu_custom_call.1} parent=15 // pred_region
          %s212 = sand.u32 %s93, 1
          %s213 = scalar_lea.sflag [#allocation6], %s212
          %s214 = sand.u32 %s93, 1
          %s215 = smul.addr %s214, 2
          %s216 = scalar_lea.vmem [#allocation5], %s215
          %s217 = sadd.s32 %s30, %s31
          %p218 = scmp.lt.s32.totalorder %s217, 0
          %s219 = scalar_select %p218, %s217, 0
          %s221 = ssub.s32 32, 32
          %222 = vsyncadd %s213, %s221
          %s223 = sadd.s32 %s219, %s29
          %s224 = smul.addr %s223, 32
          %s225 = scalar_lea.hbm %s1, %s224
          %s227 = sshll.u32 %s216, 4
          %s228 = int_to_ptr.vmem [resolvable:$true] %s227
          %230 = dma.hbm_to_vmem [thread:$0]  %s225, 32, %s228, %s213
        $region24: #{tpu_custom_call.1} parent=15 // pred_fallthru
          _
      $region16: #{tpu_custom_call.1} parent=5 // pred_fallthru
        _
      %p231 = scmp.le.s32.totalorder 1, %s22
      %p232 = scmp.lt.s32.totalorder %s22, 3
      %p233 = pnand %p231, %p232
      %p234 = pneg %p233
      // Predicated region
      $region25: #{tpu_custom_call.1} parent=5 // pred_check
        _
      $region26: #{tpu_custom_call.1} parent=5 // pred_check_branch
        %236 = sbr.rel (%p233) target = $region28
      $region27: #{tpu_custom_call.1} parent=5 // pred_region
        %s237 = ssub.s32 %s22, 1
        %s238 = sand.u32 %s62, 1
        %s239 = scalar_lea.sflag [#allocation3], %s238
        %s240 = sand.u32 %s62, 1
        %s241 = smul.addr %s240, 8
        %s242 = scalar_lea.vmem [#allocation2], %s241
        // Predicated region
        $region29: #{tpu_custom_call.1} parent=27 // pred_check
          %p243 = pneg %p75
        $region30: #{tpu_custom_call.1} parent=27 // pred_check_branch
          %245 = sbr.rel (%p243) target = $region32
        $region31: #{tpu_custom_call.1} parent=27 // pred_region
          %246 = dma.done %s239, 128
        $region32: #{tpu_custom_call.1} parent=27 // pred_fallthru
          _
        %s247 = sand.u32 %s96, 1
        %s248 = scalar_lea.sflag [#allocation6], %s247
        %s249 = sand.u32 %s96, 1
        %s250 = smul.addr %s249, 2
        %s251 = scalar_lea.vmem [#allocation5], %s250
        // Predicated region
        $region33: #{tpu_custom_call.1} parent=27 // pred_check
          %p252 = pneg %p109
        $region34: #{tpu_custom_call.1} parent=27 // pred_check_branch
          %254 = sbr.rel (%p252) target = $region36
        $region35: #{tpu_custom_call.1} parent=27 // pred_region
          %255 = dma.done %s248, 32
        $region36: #{tpu_custom_call.1} parent=27 // pred_fallthru
          _
        %s256 = sand.u32 %s62, 1
        %s257 = scalar_lea.sflag [#allocation3], %s256
        %s258 = sand.u32 %s62, 1
        %s259 = smul.addr %s258, 8
        %s260 = scalar_lea.vmem [#allocation2], %s259
        %p261 = pneg %p75
        %p262 = pneg %p72
        %s263 = sand.u32 %s96, 1
        %s264 = scalar_lea.sflag [#allocation6], %s263
        %s265 = sand.u32 %s96, 1
        %s266 = smul.addr %s265, 2
        %s267 = scalar_lea.vmem [#allocation5], %s266
        %p268 = pneg %p109
        %p269 = pneg %p106
        %p270 = pneg %p137
        %p271 = pneg %p134
        %s272 = sand.u32 %s124, 1
        %s273 = scalar_lea.sflag [#allocation4], %s272
        %s274 = sand.u32 %s124, 1
        %s275 = smul.addr %s274, 4
        %s276 = scalar_lea.vmem [#allocation7], %s275
        %p277 = pneg %p165
        %p278 = pneg %p162
        %s279 = sand.u32 %s152, 1
        %s280 = scalar_lea.sflag [#allocation9], %s279
        %s281 = sand.u32 %s152, 1
        %s282 = smul.addr %s281, 4
        %s283 = scalar_lea.vmem [#allocation8], %s282
        %s284 = sadd.s32 %s33, %s34
        %p285 = scmp.lt.s32.totalorder %s284, 0
        %s286 = scalar_select %p285, %s284, 0
        %s287 = sadd.s32 %s33, %s34
        %p288 = scmp.lt.s32.totalorder %s287, 0
        %s289 = scalar_select %p288, %s287, 0
        %p290 = scmp.eq.s32.totalorder %s34, 0
        // Predicated region
        $region37: #{tpu_custom_call.1} parent=27 // pred_check
          %p291 = pneg %p290
        $region38: #{tpu_custom_call.1} parent=27 // pred_check_branch
          %293 = sbr.rel (%p291) target = $region40
        $region39: #{tpu_custom_call.1} parent=27 // pred_region
          %294 = vst [vmem:[%s276] sm:$0xf] 0.0
          %295 = vst [vmem:[%s283] sm:$0xf] 0.0
        $region40: #{tpu_custom_call.1} parent=27 // pred_fallthru
          _
        %v296 = vld [vmem:[%s242] sm:$0x3]
        %v297 = vld [vmem:[%s242 + $0x2] sm:$0x3]
        %v298 = vld [vmem:[%s242 + $0x4] sm:$0x3]
        %v299 = vld [vmem:[%s242 + $0x6] sm:$0x3]
        %v300 = vld [vmem:[%s251] sm:$0x3]
        %vm301 = vcmask 1041408
        %v302 = vsel %vm301, %v296, -inf
        %v303 = vsel %vm301, %v297, -inf
        %v304 = vsel %vm301, %v298, -inf
        %v305 = vsel %vm301, %v299, -inf
        %v306 = vmax.f32 %v302, %v303
        %v307 = vmax.f32 %v304, %v305
        %v308 = vmax.f32 %v306, %v307
        %v309 = vsub.f32 %v296, %v308
        %v310 = vsub.f32 %v297, %v308
        %v311 = vsub.f32 %v298, %v308
        %v312 = vsub.f32 %v299, %v308
        %v313 = vmul.f32 %v309, 1.442695
        %v314 = vpow.pop %v313
        %v315 = vmul.f32 %v310, 1.442695
        %v316 = vpow.pop %v315
        %v317 = vmul.f32 %v311, 1.442695
        %v318 = vpow.pop %v317
        %v319 = vmul.f32 %v312, 1.442695
        %v320 = vpow.pop %v319
        %v321 = vsel %vm301, %v314, 0.0
        %v322 = vsel %vm301, %v316, 0.0
        %v323 = vadd.f32 %v321, %v322
        %v324 = vsel %vm301, %v318, 0.0
        %v325 = vadd.f32 %v323, %v324
        %v326 = vsel %vm301, %v320, 0.0
        %v327 = vadd.f32 %v325, %v326
        %v328 = vlog2.pop %v327
        %v329 = vmul.f32 %v328, 0.6931472
        %v330 = vadd.f32 %v329, %v308
        %vm331 = vcmp.eq.s32.totalorder %v300, 0
        %v332 = vsel %vm331, 1, 0
        %v333 = vcvt.s32.f32 %v332
        %v334 = vsel %vm301, %v333, 0.0
        %v335 = vrot.slane %v334, 4
        %v336 = vadd.f32 %v334, %v335
        %v337 = vrot.slane %v336, 2
        %v338 = vadd.f32 %v336, %v337
        %v339 = vrot.slane %v338, 1
        %v340 = vadd.f32 %v338, %v339
        %v341 = vsub.f32 %v330, %v296
        %v342 = vsel %vm331, %v341, 0.0
        %v343 = vsel %vm301, %v342, 0.0
        %v344 = vrot.slane %v343, 4
        %v345 = vadd.f32 %v343, %v344
        %v346 = vrot.slane %v345, 2
        %v347 = vadd.f32 %v345, %v346
        %v348 = vrot.slane %v347, 1
        %v349 = vadd.f32 %v347, %v348
        %v350 = vld [vmem:[%s276] sm:$0x1]
        %v351 = vadd.f32 %v350, %v340
        %352 = vst [vmem:[%s276] sm:$0x1] %v351
        %v353 = vld [vmem:[%s283] sm:$0x1]
        %v354 = vadd.f32 %v353, %v349
        %355 = vst [vmem:[%s283] sm:$0x1] %v354
        %vm356 = vcmp.eq.s32.totalorder %v300, 1
        %v357 = vsel %vm356, 1, 0
        %v358 = vcvt.s32.f32 %v357
        %v359 = vsel %vm301, %v358, 0.0
        %v360 = vrot.slane %v359, 4
        %v361 = vadd.f32 %v359, %v360
        %v362 = vrot.slane %v361, 2
        %v363 = vadd.f32 %v361, %v362
        %v364 = vrot.slane %v363, 1
        %v365 = vadd.f32 %v363, %v364
        %v366 = vsub.f32 %v330, %v297
        %v367 = vsel %vm356, %v366, 0.0
        %v368 = vsel %vm301, %v367, 0.0
        %v369 = vrot.slane %v368, 4
        %v370 = vadd.f32 %v368, %v369
        %v371 = vrot.slane %v370, 2
        %v372 = vadd.f32 %v370, %v371
        %v373 = vrot.slane %v372, 1
        %v374 = vadd.f32 %v372, %v373
        %v375 = vld [vmem:[%s276 + $0x1] sm:$0x1]
        %v376 = vadd.f32 %v375, %v365
        %377 = vst [vmem:[%s276 + $0x1] sm:$0x1] %v376
        %v378 = vld [vmem:[%s283 + $0x1] sm:$0x1]
        %v379 = vadd.f32 %v378, %v374
        %380 = vst [vmem:[%s283 + $0x1] sm:$0x1] %v379
        %vm381 = vcmp.eq.s32.totalorder %v300, 2
        %v382 = vsel %vm381, 1, 0
        %v383 = vcvt.s32.f32 %v382
        %v384 = vsel %vm301, %v383, 0.0
        %v385 = vrot.slane %v384, 4
        %v386 = vadd.f32 %v384, %v385
        %v387 = vrot.slane %v386, 2
        %v388 = vadd.f32 %v386, %v387
        %v389 = vrot.slane %v388, 1
        %v390 = vadd.f32 %v388, %v389
        %v391 = vsub.f32 %v330, %v298
        %v392 = vsel %vm381, %v391, 0.0
        %v393 = vsel %vm301, %v392, 0.0
        %v394 = vrot.slane %v393, 4
        %v395 = vadd.f32 %v393, %v394
        %v396 = vrot.slane %v395, 2
        %v397 = vadd.f32 %v395, %v396
        %v398 = vrot.slane %v397, 1
        %v399 = vadd.f32 %v397, %v398
        %v400 = vld [vmem:[%s276 + $0x2] sm:$0x1]
        %v401 = vadd.f32 %v400, %v390
        %402 = vst [vmem:[%s276 + $0x2] sm:$0x1] %v401
        %v403 = vld [vmem:[%s283 + $0x2] sm:$0x1]
        %v404 = vadd.f32 %v403, %v399
        %405 = vst [vmem:[%s283 + $0x2] sm:$0x1] %v404
        %vm406 = vcmp.eq.s32.totalorder %v300, 3
        %v407 = vsel %vm406, 1, 0
        %v408 = vcvt.s32.f32 %v407
        %v409 = vsel %vm301, %v408, 0.0
        %v410 = vrot.slane %v409, 4
        %v411 = vadd.f32 %v409, %v410
        %v412 = vrot.slane %v411, 2
        %v413 = vadd.f32 %v411, %v412
        %v414 = vrot.slane %v413, 1
        %v415 = vadd.f32 %v413, %v414
        %v416 = vsub.f32 %v330, %v299
        %v417 = vsel %vm406, %v416, 0.0
        %v418 = vsel %vm301, %v417, 0.0
        %v419 = vrot.slane %v418, 4
        %v420 = vadd.f32 %v418, %v419
        %v421 = vrot.slane %v420, 2
        %v422 = vadd.f32 %v420, %v421
        %v423 = vrot.slane %v422, 1
        %v424 = vadd.f32 %v422, %v423
        %v425 = vld [vmem:[%s276 + $0x3] sm:$0x1]
        %v426 = vadd.f32 %v425, %v415
        %427 = vst [vmem:[%s276 + $0x3] sm:$0x1] %v426
        %v428 = vld [vmem:[%s283 + $0x3] sm:$0x1]
        %v429 = vadd.f32 %v428, %v424
        %430 = vst [vmem:[%s283 + $0x3] sm:$0x1] %v429
        %s431 = sand.u32 %s124, 1
        %s432 = scalar_lea.sflag [#allocation4], %s431
        %s433 = sand.u32 %s124, 1
        %s434 = smul.addr %s433, 4
        %s435 = scalar_lea.vmem [#allocation7], %s434
        %s436 = sand.u32 %s152, 1
        %s437 = scalar_lea.sflag [#allocation9], %s436
        %s438 = sand.u32 %s152, 1
        %s439 = smul.addr %s438, 4
        %s440 = scalar_lea.vmem [#allocation8], %s439
        // Predicated region
        $region41: #{tpu_custom_call.1} parent=27 // pred_check
          %p441 = pneg %p134
        $region42: #{tpu_custom_call.1} parent=27 // pred_check_branch
          %443 = sbr.rel (%p441) target = $region44
        $region43: #{tpu_custom_call.1} parent=27 // pred_region
          %s445 = ssub.s32 64, 64
          %446 = vsyncadd %s432, %s445
          %s447 = sadd.s32 %s33, %s32
          %s448 = smul.addr %s447, 64
          %s449 = scalar_lea.hbm %s2, %s448
          %s451 = sshll.u32 %s435, 4
          %s452 = int_to_ptr.vmem [resolvable:$true] %s451
          %454 = dma.vmem_to_hbm [thread:$0]  %s452, 64, %s449, %s432
        $region44: #{tpu_custom_call.1} parent=27 // pred_fallthru
          _
        // Predicated region
        $region45: #{tpu_custom_call.1} parent=27 // pred_check
          %p455 = pneg %p162
        $region46: #{tpu_custom_call.1} parent=27 // pred_check_branch
          %457 = sbr.rel (%p455) target = $region48
        $region47: #{tpu_custom_call.1} parent=27 // pred_region
          %s459 = ssub.s32 64, 64
          %460 = vsyncadd %s437, %s459
          %s461 = sadd.s32 %s33, %s32
          %s462 = smul.addr %s461, 64
          %s463 = scalar_lea.hbm %s3, %s462
          %s465 = sshll.u32 %s440, 4
          %s466 = int_to_ptr.vmem [resolvable:$true] %s465
          %468 = dma.vmem_to_hbm [thread:$0]  %s466, 64, %s463, %s437
        $region48: #{tpu_custom_call.1} parent=27 // pred_fallthru
          _
      $region28: #{tpu_custom_call.1} parent=5 // pred_fallthru
        _
      %p469 = scmp.le.s32.totalorder 2, %s22
      // Predicated region
      $region49: #{tpu_custom_call.1} parent=5 // pred_check
        %p470 = pneg %p469
      $region50: #{tpu_custom_call.1} parent=5 // pred_check_branch
        %472 = sbr.rel (%p470) target = $region52
      $region51: #{tpu_custom_call.1} parent=5 // pred_region
        %s473 = ssub.s32 %s22, 2
        // Predicated region
        $region53: #{tpu_custom_call.1} parent=51 // pred_check
          %p474 = pneg %p140
        $region54: #{tpu_custom_call.1} parent=51 // pred_check_branch
          %476 = sbr.rel (%p474) target = $region56
        $region55: #{tpu_custom_call.1} parent=51 // pred_region
          %s477 = sand.u32 %s125, 1
          %s478 = scalar_lea.sflag [#allocation4], %s477
          %s479 = sand.u32 %s125, 1
          %s480 = smul.addr %s479, 4
          %s481 = scalar_lea.vmem [#allocation7], %s480
          %482 = dma.done %s478, 64
        $region56: #{tpu_custom_call.1} parent=51 // pred_fallthru
          _
        // Predicated region
        $region57: #{tpu_custom_call.1} parent=51 // pred_check
          %p483 = pneg %p168
        $region58: #{tpu_custom_call.1} parent=51 // pred_check_branch
          %485 = sbr.rel (%p483) target = $region60
        $region59: #{tpu_custom_call.1} parent=51 // pred_region
          %s486 = sand.u32 %s153, 1
          %s487 = scalar_lea.sflag [#allocation9], %s486
          %s488 = sand.u32 %s153, 1
          %s489 = smul.addr %s488, 4
          %s490 = scalar_lea.vmem [#allocation8], %s489
          %491 = dma.done %s487, 64
        $region60: #{tpu_custom_call.1} parent=51 // pred_fallthru
          _
      $region52: #{tpu_custom_call.1} parent=5 // pred_fallthru
        _
    $region6: #{tpu_custom_call.1} parent=1 // loop_footer
      %s26 = sadd.s32 1, %s22
    $region7: #{tpu_custom_call.1} parent=1 // loop_footer_branch
      %21 = sbr.rel target = $region3
    $region8: #{tpu_custom_call.1} parent=1 // loop_exit
      _
    %492 = vsyncpa [#allocation3], 1
    %s493 = scalar_lea.sflag [#allocation3], 1
    %494 = vsyncpa %s493, 1
    %495 = vsyncpa [#allocation6], 1
    %s496 = scalar_lea.sflag [#allocation6], 1
    %497 = vsyncpa %s496, 1
    %498 = vsyncpa [#allocation4], 1
    %s499 = scalar_lea.sflag [#allocation4], 1
    %500 = vsyncpa %s499, 1
    %501 = vsyncpa [#allocation9], 1
    %s502 = scalar_lea.sflag [#allocation9], 1
    %503 = vsyncpa %s502, 1

</llo_original>
